<compile_context>
chip_gen: v7x
topology: tpu7x:2x2x1
jax: 0.10.0
libtpu: 0.0.40
codegen_flags: <defaults>
</compile_context>

<pallas_src>
import functools

import jax
import jax.numpy as jnp
from jax.experimental import pallas as pl
from jax.experimental.pallas import tpu as pltpu

# TODO(synk): `TCN_single` is an undefined module-level global in the reference;
# default to the log_softmax branch (False).  Set True for sigmoid(o)*o.
TCN_SINGLE = False

# MXU operand dtype (f32 accumulation everywhere; epilogue math stays f32 on
# the VPU, which also keeps v5e happy — its VPU/EUP has no native bf16).
COMPUTE_DTYPE = jnp.bfloat16

# Contraction width at which a single stacked-tap matmul stops paying for its
# (K*C, BW) operand and K accumulating dots are used instead (the MXU is
# already full at a ~256-wide contraction on v6e/v7x).
_STACKED_TAP_MAX_CONTRACTION = 256


def _round_up(x, m):
    return -(-x // m) * m


def _vmem_capacity_bytes(default=64 * 1024 * 1024):
    try:
        cap = getattr(pltpu.get_tpu_info(), "vmem_capacity_bytes", None)
        if cap:
            return int(cap)
    except Exception:
        pass
    return default


# ---------------------------------------------------------------------------
# Fused kernel: all TemporalBlocks + Linear head + log_softmax for one batch
# tile.  Activations live as a channel-major (C, b_tile*W_pad) value slab,
# batch segments packed on the lane axis, W_pad a multiple of 128.
# ---------------------------------------------------------------------------
def _tcn_fused_kernel(x_ref, mask_ref, *rest, layer_meta, K, W_pad, last_col,
                      single, cdt):
    out_ref = rest[-1]
    wrefs = rest[:-1]

    A = x_ref[...]                               # (C_in_pad, BW) f32, pad cols zero
    BW = A.shape[1]
    b_tile = BW // W_pad
    mrow = mask_ref[...]                         # (1, BW) f32: 1 on data columns

    # Hoisted mask broadcasts: one materialized (C, BW) mask per channel count
    # (JAX does not CSE broadcast_in_dim across the unrolled layer loop).
    masks = {}

    def mask_for(c):
        if c not in masks:
            masks[c] = jnp.broadcast_to(mrow, (c, BW))
        return masks[c]

    def tap(a32, s):
        # Causal tap: value at column t becomes a[t - s].  Lane roll runs on the
        # XLU; wrapped lanes only land in (masked) guard columns because every
        # shift s <= pad_max and data columns never read across a segment.
        r = pltpu.roll(a32, shift=s, axis=1) if s else a32
        return r.astype(cdt)

    def causal_conv(a32, w_ref, b_ref, dil, c_in):
        shifts = [(K - 1 - k) * dil for k in range(K)]
        if K * c_in >= _STACKED_TAP_MAX_CONTRACTION:
            # MXU already saturated: K accumulating dots, ~K x less live VMEM.
            acc = None
            for k, s in enumerate(shifts):
                part = jnp.dot(w_ref[:, k * c_in:(k + 1) * c_in], tap(a32, s),
                               preferred_element_type=jnp.float32)
                acc = part if acc is None else acc + part
            return acc + b_ref[...]
        # Small contraction: stack the K taps (in bf16) into one MXU push.
        stacked = jnp.concatenate([tap(a32, s) for s in shifts], axis=0)
        return jnp.dot(w_ref[...], stacked,
                       preferred_element_type=jnp.float32) + b_ref[...]

    # ---- TemporalBlock stack (static layer loop; dropout = identity in eval) --
    wi = 0
    for dil, has_down, c_in, c_out in layer_meta:
        w1, b1, w2, b2 = wrefs[wi:wi + 4]
        wi += 4
        if has_down:
            wd, bd = wrefs[wi:wi + 2]
            wi += 2
        m = mask_for(c_out)
        # conv1 -> chomp (implicit) -> ReLU; mask keeps guard columns zero.
        h1 = m * jnp.maximum(causal_conv(A, w1, b1, dil, c_in), 0.0)
        # conv2 -> chomp -> ReLU
        h2 = jnp.maximum(causal_conv(h1, w2, b2, dil, c_out), 0.0)
        # residual (1x1 conv iff channel counts differ)
        if has_down:
            res = jnp.dot(wd[...], A.astype(cdt),
                          preferred_element_type=jnp.float32) + bd[...]
        else:
            res = A
        # final ReLU; re-mask so the causal zeros survive into the next layer.
        A = m * jnp.maximum(h2 + res, 0.0)

    # ---- head: Linear on the last timestep of each segment + log_softmax -----
    w_head, b_head = wrefs[wi], wrefs[wi + 1]    # (O, C_last_pad) cdt, (O, 1) f32
    cols = [A[:, b * W_pad + last_col: b * W_pad + last_col + 1]
            for b in range(b_tile)]
    y_last = jnp.concatenate(cols, axis=1) if b_tile > 1 else cols[0]  # (C, b)
    logits = jnp.dot(w_head[...], y_last.astype(cdt),
                     preferred_element_type=jnp.float32) + b_head[...]  # (O, b)
    if single:
        out = jax.nn.sigmoid(logits) * logits
    else:
        mx = jnp.max(logits, axis=0, keepdims=True)
        sh = logits - mx
        out = sh - jnp.log(jnp.sum(jnp.exp(sh), axis=0, keepdims=True))
    out_ref[0] = out                             # (O, b_tile) block


# ---------------------------------------------------------------------------
# Wrapper: lane-dense packing, generation-aware tiling, pallas_call launch.
# ---------------------------------------------------------------------------
def _full_spec(a):
    nd = a.ndim
    return pl.BlockSpec(a.shape, lambda n, _nd=nd: (0,) * _nd)


def tcn_forward(x, params, head, *, kernel_size, dilation, single=TCN_SINGLE,
                compute_dtype=COMPUTE_DTYPE, b_tile=None):
    """x: (N, C_in, L).  params / head: kernel-ready form from make_params."""
    N, C_in, L = x.shape
    K = kernel_size
    num_layers = len(params)
    dils = [dilation ** i for i in range(num_layers)]
    pad_max = (K - 1) * max(dils) if num_layers else 0
    W_pad = _round_up(pad_max + L, 128)          # lane-aligned segment width
    last_col = pad_max + L - 1

    w_head, b_head = head                        # (O, C_last_pad) cdt, (O, 1) f32
    O = w_head.shape[0]
    C_in_pad = params[0]["w1"].shape[1] // K

    layer_meta, weight_args, weight_specs = [], [], []
    c_prev_pad = C_in_pad
    for i, p in enumerate(params):
        c_out_pad = p["w1"].shape[0]
        layer_meta.append((dils[i], p["wd"] is not None, c_prev_pad, c_out_pad))
        for name in ("w1", "b1", "w2", "b2"):
            weight_args.append(p[name])
            weight_specs.append(_full_spec(p[name]))
        if p["wd"] is not None:
            for name in ("wd", "bd"):
                weight_args.append(p[name])
                weight_specs.append(_full_spec(p[name]))
        c_prev_pad = c_out_pad
    weight_args += [w_head, b_head]
    weight_specs += [_full_spec(w_head), _full_spec(b_head)]
    c_max_pad = max([m[3] for m in layer_meta] + [C_in_pad])

    # ---- generation-aware VMEM budget / batch tiling --------------------------
    vmem_cap = _vmem_capacity_bytes()            # ~64 MiB v7x, ~128 MiB v5e/v6e
    act_budget = max(4 << 20, int(vmem_cap * 0.35))
    vmem_limit = int(min(vmem_cap * 0.9, 100 * 1024 * 1024))
    # rough live bytes per batch element: a few f32 slabs + bf16 taps/stack
    per_b = W_pad * c_max_pad * (16 + 2 * K)

    if b_tile is None:
        if N <= 8:
            b_tile = N                           # tiny batch: one whole-batch tile
        else:
            cap = max(8, (act_budget // per_b) // 8 * 8)
            half = max(8, ((N // 2) // 8) * 8)   # aim for >=2 tiles (both v7x TCs)
            b_tile = min(cap, half)
    num_tiles = -(-N // b_tile)
    N_pad = num_tiles * b_tile
    BW = b_tile * W_pad

    # ---- wrapper-side lane-dense packing --------------------------------------
    # Each segment = [pad_max causal zeros | x[b] | alignment zeros]; channels
    # zero-padded to C_in_pad; batch zero-padded to N_pad.
    x_p = jnp.pad(x, ((0, N_pad - N), (0, C_in_pad - C_in),
                      (pad_max, W_pad - pad_max - L)))
    slab = jnp.transpose(x_p, (1, 0, 2)).reshape(C_in_pad, N_pad * W_pad)
    mask_row = jnp.zeros((1, W_pad), jnp.float32)
    mask_row = mask_row.at[:, pad_max:pad_max + L].set(1.0)
    mask_row = jnp.tile(mask_row, (1, b_tile))   # (1, BW), identical per tile

    in_specs = ([pl.BlockSpec((C_in_pad, BW), lambda n: (0, n)),
                 pl.BlockSpec((1, BW), lambda n: (0, 0))] + weight_specs)
    # NOTE: weight index_maps are constant across the grid, so Pallas skips the
    # re-fetch after the first step; pl.Buffered(1) would also drop the second
    # weight buffer but is left out for maximum lowering compatibility.

    kernel = functools.partial(
        _tcn_fused_kernel, layer_meta=tuple(layer_meta), K=K, W_pad=W_pad,
        last_col=last_col, single=single, cdt=compute_dtype)

    flops = 0
    for dil, has_down, cin, cout in layer_meta:
        flops += 2 * (cout * K * cin + cout * K * cout
                      + (cout * cin if has_down else 0)) * N_pad * L
    flops += 2 * N_pad * w_head.shape[1] * O
    bytes_accessed = (int(slab.size) * 4 + N_pad * O * 4
                      + sum(int(a.size) * a.dtype.itemsize for a in weight_args))
    cost = pl.CostEstimate(flops=int(flops), transcendentals=int(N_pad * O),
                           bytes_accessed=int(bytes_accessed))

    out3 = pl.pallas_call(
        kernel,
        out_shape=jax.ShapeDtypeStruct((num_tiles, O, b_tile), jnp.float32),
        grid=(num_tiles,),
        in_specs=in_specs,
        out_specs=pl.BlockSpec((1, O, b_tile), lambda n: (n, 0, 0)),
        compiler_params=pltpu.CompilerParams(
            dimension_semantics=("parallel",),
            vmem_limit_bytes=vmem_limit),
        cost_estimate=cost,
    )(slab, mask_row, *weight_args)

    out = jnp.transpose(out3, (0, 2, 1)).reshape(N_pad, O)
    return out[:N] if N_pad != N else out


# ---------------------------------------------------------------------------
# Parameter setup: deterministic init, PyTorch weight_norm semantics, channel
# padding to sublane multiples, taps pre-stacked to (C_out_pad, K*C_in_pad),
# MXU operands cast to bf16.  Also returns plain f32 params for the reference.
# ---------------------------------------------------------------------------
def _weight_norm(v, g):
    # nn.utils.weight_norm(conv, dim=0): w = g * v / ||v||, norm over (C_in, K).
    norm = jnp.sqrt(jnp.sum(v * v, axis=(1, 2), keepdims=True))
    return g.reshape(-1, 1, 1) * v / norm


def _stack_taps_padded(w, c_out_pad, c_in_pad, dtype):
    # (C_out, C_in, K) -> zero-pad channels -> (C_out_pad, K*C_in_pad),
    # tap-major blocks on the contraction axis (matches the kernel's rolls).
    c_out, c_in, k = w.shape
    w = jnp.pad(w, ((0, c_out_pad - c_out), (0, c_in_pad - c_in), (0, 0)))
    return jnp.transpose(w, (0, 2, 1)).reshape(c_out_pad, k * c_in_pad).astype(dtype)


def _pad_bias(b, c_pad):
    return jnp.pad(b, (0, c_pad - b.shape[0])).reshape(c_pad, 1)


def make_params(key, input_size, output_size, num_channels, kernel_size,
                compute_dtype=COMPUTE_DTYPE):
    """Returns (kernel_params, kernel_head, ref_params, ref_head)."""
    K = kernel_size
    params, ref_params = [], []
    c_prev, c_prev_pad = input_size, _round_up(input_size, 8)
    for c_out in num_channels:
        c_out_pad = _round_up(c_out, 8)
        key, k1, k2, k3, k4, k5, k6, k7, k8 = jax.random.split(key, 9)
        v1 = 0.01 * jax.random.normal(k1, (c_out, c_prev, K), jnp.float32)
        g1 = 1.0 + 0.1 * jax.random.normal(k2, (c_out,), jnp.float32)
        b1 = 0.01 * jax.random.normal(k3, (c_out,), jnp.float32)
        v2 = 0.01 * jax.random.normal(k4, (c_out, c_out, K), jnp.float32)
        g2 = 1.0 + 0.1 * jax.random.normal(k5, (c_out,), jnp.float32)
        b2 = 0.01 * jax.random.normal(k6, (c_out,), jnp.float32)
        w1 = _weight_norm(v1, g1)
        w2 = _weight_norm(v2, g2)
        if c_prev != c_out:  # PyTorch TCN: downsample 1x1 conv iff C_in != C_out
            wd = 0.01 * jax.random.normal(k7, (c_out, c_prev), jnp.float32)
            bd = 0.01 * jax.random.normal(k8, (c_out,), jnp.float32)
        else:
            wd = bd = None
        ref_params.append(dict(w1=w1, b1=b1, w2=w2, b2=b2, wd=wd, bd=bd))
        params.append(dict(
            w1=_stack_taps_padded(w1, c_out_pad, c_prev_pad, compute_dtype),
            b1=_pad_bias(b1, c_out_pad),
            w2=_stack_taps_padded(w2, c_out_pad, c_out_pad, compute_dtype),
            b2=_pad_bias(b2, c_out_pad),
            wd=None if wd is None else jnp.pad(
                wd, ((0, c_out_pad - c_out), (0, c_prev_pad - c_prev))
            ).astype(compute_dtype),
            bd=None if bd is None else _pad_bias(bd, c_out_pad)))
        c_prev, c_prev_pad = c_out, c_out_pad
    key, kw, kb = jax.random.split(key, 3)
    w_lin = 0.1 * jax.random.normal(kw, (output_size, c_prev), jnp.float32)
    b_lin = 0.01 * jax.random.normal(kb, (output_size,), jnp.float32)
    ref_head = (w_lin, b_lin)
    head = (jnp.pad(w_lin, ((0, 0), (0, c_prev_pad - c_prev))).astype(compute_dtype),
            b_lin.reshape(output_size, 1))
    return params, head, ref_params, ref_head


# ---------------------------------------------------------------------------
# Pure-JAX reference (f32, highest precision) for validation.
# ---------------------------------------------------------------------------
def tcn_reference(x, ref_params, ref_head, *, kernel_size, dilation,
                  single=TCN_SINGLE):
    K = kernel_size
    hp = jax.lax.Precision.HIGHEST
    y = x
    for i, p in enumerate(ref_params):
        d = dilation ** i
        pad = (K - 1) * d

        def conv(a, w, b, d=d, pad=pad):
            ap = jnp.pad(a, ((0, 0), (0, 0), (pad, 0)))
            out = sum(jnp.einsum('oc,ncl->nol', w[:, :, k],
                                 ap[:, :, k * d:k * d + a.shape[2]],
                                 precision=hp) for k in range(K))
            return out + b[None, :, None]

        h1 = jax.nn.relu(conv(y, p["w1"], p["b1"]))
        h2 = jax.nn.relu(conv(h1, p["w2"], p["b2"]))
        if p["wd"] is not None:
            res = (jnp.einsum('oc,ncl->nol', p["wd"], y, precision=hp)
                   + p["bd"][None, :, None])
        else:
            res = y
        y = jax.nn.relu(h2 + res)
    w_lin, b_lin = ref_head
    logits = jnp.dot(y[:, :, -1], w_lin.T, precision=hp) + b_lin
    if single:
        return jax.nn.sigmoid(logits) * logits
    return jax.nn.log_softmax(logits, axis=1)


if __name__ == "__main__":
    # Small shapes consistent with the module's forward: inputs are (N, C_in, L).
    N, input_size, L = 2, 4, 16
    num_channels = [8, 8]
    kernel_size = 3
    dilation = 2
    output_size = 3
    # dropout = 0.2 at construction time, but the forward here is eval (identity).

    key = jax.random.PRNGKey(0)
    key, kx = jax.random.split(key)
    x = jax.random.normal(kx, (N, input_size, L), jnp.float32)

    params, head, ref_params, ref_head = make_params(
        key, input_size, output_size, num_channels, kernel_size)

    out = tcn_forward(x, params, head, kernel_size=kernel_size,
                      dilation=dilation)
    out = jax.block_until_ready(out)
    assert out.shape == (N, output_size)

    ref = tcn_reference(x, ref_params, ref_head, kernel_size=kernel_size,
                        dilation=dilation)
    ref = jax.block_until_ready(ref)
    # bf16 MXU operands (f32 accumulation) -> small drift vs the f32 reference.
    err = float(jnp.max(jnp.abs(out - ref)))
    assert err < 5e-2, f"mismatch vs JAX reference: {err}"

    print("KERNEL_OK")
</pallas_src>

<mosaic_0001>
module attributes {stable_mosaic.version = 11 : i64} {
  func.func @_tcn_fused_kernel(%arg0: i32, %arg1: memref<8x256xf32, #tpu.memory_space<vmem>>, %arg2: memref<1x256xf32, #tpu.memory_space<vmem>>, %arg3: memref<8x24xbf16, #tpu.memory_space<vmem>>, %arg4: memref<8x1xf32, #tpu.memory_space<vmem>>, %arg5: memref<8x24xbf16, #tpu.memory_space<vmem>>, %arg6: memref<8x1xf32, #tpu.memory_space<vmem>>, %arg7: memref<8x8xbf16, #tpu.memory_space<vmem>>, %arg8: memref<8x1xf32, #tpu.memory_space<vmem>>, %arg9: memref<8x24xbf16, #tpu.memory_space<vmem>>, %arg10: memref<8x1xf32, #tpu.memory_space<vmem>>, %arg11: memref<8x24xbf16, #tpu.memory_space<vmem>>, %arg12: memref<8x1xf32, #tpu.memory_space<vmem>>, %arg13: memref<3x8xbf16, #tpu.memory_space<vmem>>, %arg14: memref<3x1xf32, #tpu.memory_space<vmem>>, %arg15: memref<1x3x2xf32, #tpu.memory_space<vmem>>) attributes {dimension_semantics = [#tpu.dimension_semantics<parallel>], iteration_bounds = array<i64: 1>, scalar_prefetch = 0 : i64, scratch_operands = 0 : i64, tpu.core_type = #tpu.core_type<tc>, window_params = [{transform_indices = @transform_0, window_bounds = array<i64: 8, 256>}, {pipeline_mode = #tpu.pipeline_mode<synchronous>, transform_indices = @transform_1, window_bounds = array<i64: 1, 256>}, {pipeline_mode = #tpu.pipeline_mode<synchronous>, transform_indices = @transform_2, window_bounds = array<i64: 8, 24>}, {pipeline_mode = #tpu.pipeline_mode<synchronous>, transform_indices = @transform_3, window_bounds = array<i64: 8, 1>}, {pipeline_mode = #tpu.pipeline_mode<synchronous>, transform_indices = @transform_4, window_bounds = array<i64: 8, 24>}, {pipeline_mode = #tpu.pipeline_mode<synchronous>, transform_indices = @transform_5, window_bounds = array<i64: 8, 1>}, {pipeline_mode = #tpu.pipeline_mode<synchronous>, transform_indices = @transform_6, window_bounds = array<i64: 8, 8>}, {pipeline_mode = #tpu.pipeline_mode<synchronous>, transform_indices = @transform_7, window_bounds = array<i64: 8, 1>}, {pipeline_mode = #tpu.pipeline_mode<synchronous>, transform_indices = @transform_8, window_bounds = array<i64: 8, 24>}, {pipeline_mode = #tpu.pipeline_mode<synchronous>, transform_indices = @transform_9, window_bounds = array<i64: 8, 1>}, {pipeline_mode = #tpu.pipeline_mode<synchronous>, transform_indices = @transform_10, window_bounds = array<i64: 8, 24>}, {pipeline_mode = #tpu.pipeline_mode<synchronous>, transform_indices = @transform_11, window_bounds = array<i64: 8, 1>}, {pipeline_mode = #tpu.pipeline_mode<synchronous>, transform_indices = @transform_12, window_bounds = array<i64: 3, 8>}, {pipeline_mode = #tpu.pipeline_mode<synchronous>, transform_indices = @transform_13, window_bounds = array<i64: 3, 1>}, {transform_indices = @transform_14, window_bounds = array<i64: 1, 3, 2>}]} {
    %c0 = arith.constant 0 : index
    %c0_0 = arith.constant 0 : index
    %0 = vector.load %arg1[%c0, %c0_0] : memref<8x256xf32, #tpu.memory_space<vmem>>, vector<8x256xf32>
    %c0_1 = arith.constant 0 : index
    %c0_2 = arith.constant 0 : index
    %1 = vector.load %arg2[%c0_1, %c0_2] : memref<1x256xf32, #tpu.memory_space<vmem>>, vector<1x256xf32>
    %2 = vector.shape_cast %1 : vector<1x256xf32> to vector<1x256xf32>
    %3 = vector.broadcast %2 : vector<1x256xf32> to vector<8x256xf32>
    %c2_i32 = arith.constant 2 : i32
    %4 = tpu.dynamic_rotate %0 by %c2_i32 dim 1 : vector<8x256xf32>, i32 -> vector<8x256xf32>
    %5 = arith.truncf %4 : vector<8x256xf32> to vector<8x256xbf16>
    %c1_i32 = arith.constant 1 : i32
    %6 = tpu.dynamic_rotate %0 by %c1_i32 dim 1 : vector<8x256xf32>, i32 -> vector<8x256xf32>
    %7 = arith.truncf %6 : vector<8x256xf32> to vector<8x256xbf16>
    %8 = arith.truncf %0 : vector<8x256xf32> to vector<8x256xbf16>
    %9 = tpu.concatenate %5, %7, %8 in 0 : vector<8x256xbf16>, vector<8x256xbf16>, vector<8x256xbf16> -> vector<24x256xbf16>
    %c0_3 = arith.constant 0 : index
    %c0_4 = arith.constant 0 : index
    %10 = vector.load %arg3[%c0_3, %c0_4] : memref<8x24xbf16, #tpu.memory_space<vmem>>, vector<8x24xbf16>
    %cst = arith.constant dense<0.000000e+00> : vector<8x256xf32>
    %11 = tpu.matmul %10, %9, %cst {dimension_numbers = #tpu.dot_dimension_numbers<[1], [0], [0], [1], [0, 0, 1, 1], [], []>} : vector<8x24xbf16>, vector<24x256xbf16>, vector<8x256xf32> -> vector<8x256xf32>
    %c0_5 = arith.constant 0 : index
    %c0_6 = arith.constant 0 : index
    %12 = vector.load %arg4[%c0_5, %c0_6] : memref<8x1xf32, #tpu.memory_space<vmem>>, vector<8x1xf32>
    %13 = vector.broadcast %12 : vector<8x1xf32> to vector<8x256xf32>
    %14 = arith.addf %11, %13 : vector<8x256xf32>
    %cst_7 = arith.constant 0.000000e+00 : f32
    %15 = vector.broadcast %cst_7 : f32 to vector<8x256xf32>
    %16 = arith.maximumf %14, %15 : vector<8x256xf32>
    %17 = arith.mulf %3, %16 : vector<8x256xf32>
    %c2_i32_8 = arith.constant 2 : i32
    %18 = tpu.dynamic_rotate %17 by %c2_i32_8 dim 1 : vector<8x256xf32>, i32 -> vector<8x256xf32>
    %19 = arith.truncf %18 : vector<8x256xf32> to vector<8x256xbf16>
    %c1_i32_9 = arith.constant 1 : i32
    %20 = tpu.dynamic_rotate %17 by %c1_i32_9 dim 1 : vector<8x256xf32>, i32 -> vector<8x256xf32>
    %21 = arith.truncf %20 : vector<8x256xf32> to vector<8x256xbf16>
    %22 = arith.truncf %17 : vector<8x256xf32> to vector<8x256xbf16>
    %23 = tpu.concatenate %19, %21, %22 in 0 : vector<8x256xbf16>, vector<8x256xbf16>, vector<8x256xbf16> -> vector<24x256xbf16>
    %c0_10 = arith.constant 0 : index
    %c0_11 = arith.constant 0 : index
    %24 = vector.load %arg5[%c0_10, %c0_11] : memref<8x24xbf16, #tpu.memory_space<vmem>>, vector<8x24xbf16>
    %cst_12 = arith.constant dense<0.000000e+00> : vector<8x256xf32>
    %25 = tpu.matmul %24, %23, %cst_12 {dimension_numbers = #tpu.dot_dimension_numbers<[1], [0], [0], [1], [0, 0, 1, 1], [], []>} : vector<8x24xbf16>, vector<24x256xbf16>, vector<8x256xf32> -> vector<8x256xf32>
    %c0_13 = arith.constant 0 : index
    %c0_14 = arith.constant 0 : index
    %26 = vector.load %arg6[%c0_13, %c0_14] : memref<8x1xf32, #tpu.memory_space<vmem>>, vector<8x1xf32>
    %27 = vector.broadcast %26 : vector<8x1xf32> to vector<8x256xf32>
    %28 = arith.addf %25, %27 : vector<8x256xf32>
    %cst_15 = arith.constant 0.000000e+00 : f32
    %29 = vector.broadcast %cst_15 : f32 to vector<8x256xf32>
    %30 = arith.maximumf %28, %29 : vector<8x256xf32>
    %c0_16 = arith.constant 0 : index
    %c0_17 = arith.constant 0 : index
    %31 = vector.load %arg7[%c0_16, %c0_17] : memref<8x8xbf16, #tpu.memory_space<vmem>>, vector<8x8xbf16>
    %32 = arith.truncf %0 : vector<8x256xf32> to vector<8x256xbf16>
    %cst_18 = arith.constant dense<0.000000e+00> : vector<8x256xf32>
    %33 = tpu.matmul %31, %32, %cst_18 {dimension_numbers = #tpu.dot_dimension_numbers<[1], [0], [0], [1], [0, 0, 1, 1], [], []>} : vector<8x8xbf16>, vector<8x256xbf16>, vector<8x256xf32> -> vector<8x256xf32>
    %c0_19 = arith.constant 0 : index
    %c0_20 = arith.constant 0 : index
    %34 = vector.load %arg8[%c0_19, %c0_20] : memref<8x1xf32, #tpu.memory_space<vmem>>, vector<8x1xf32>
    %35 = vector.broadcast %34 : vector<8x1xf32> to vector<8x256xf32>
    %36 = arith.addf %33, %35 : vector<8x256xf32>
    %37 = arith.addf %30, %36 : vector<8x256xf32>
    %cst_21 = arith.constant 0.000000e+00 : f32
    %38 = vector.broadcast %cst_21 : f32 to vector<8x256xf32>
    %39 = arith.maximumf %37, %38 : vector<8x256xf32>
    %40 = arith.mulf %3, %39 : vector<8x256xf32>
    %c4_i32 = arith.constant 4 : i32
    %41 = tpu.dynamic_rotate %40 by %c4_i32 dim 1 : vector<8x256xf32>, i32 -> vector<8x256xf32>
    %42 = arith.truncf %41 : vector<8x256xf32> to vector<8x256xbf16>
    %c2_i32_22 = arith.constant 2 : i32
    %43 = tpu.dynamic_rotate %40 by %c2_i32_22 dim 1 : vector<8x256xf32>, i32 -> vector<8x256xf32>
    %44 = arith.truncf %43 : vector<8x256xf32> to vector<8x256xbf16>
    %45 = arith.truncf %40 : vector<8x256xf32> to vector<8x256xbf16>
    %46 = tpu.concatenate %42, %44, %45 in 0 : vector<8x256xbf16>, vector<8x256xbf16>, vector<8x256xbf16> -> vector<24x256xbf16>
    %c0_23 = arith.constant 0 : index
    %c0_24 = arith.constant 0 : index
    %47 = vector.load %arg9[%c0_23, %c0_24] : memref<8x24xbf16, #tpu.memory_space<vmem>>, vector<8x24xbf16>
    %cst_25 = arith.constant dense<0.000000e+00> : vector<8x256xf32>
    %48 = tpu.matmul %47, %46, %cst_25 {dimension_numbers = #tpu.dot_dimension_numbers<[1], [0], [0], [1], [0, 0, 1, 1], [], []>} : vector<8x24xbf16>, vector<24x256xbf16>, vector<8x256xf32> -> vector<8x256xf32>
    %c0_26 = arith.constant 0 : index
    %c0_27 = arith.constant 0 : index
    %49 = vector.load %arg10[%c0_26, %c0_27] : memref<8x1xf32, #tpu.memory_space<vmem>>, vector<8x1xf32>
    %50 = vector.broadcast %49 : vector<8x1xf32> to vector<8x256xf32>
    %51 = arith.addf %48, %50 : vector<8x256xf32>
    %cst_28 = arith.constant 0.000000e+00 : f32
    %52 = vector.broadcast %cst_28 : f32 to vector<8x256xf32>
    %53 = arith.maximumf %51, %52 : vector<8x256xf32>
    %54 = arith.mulf %3, %53 : vector<8x256xf32>
    %c4_i32_29 = arith.constant 4 : i32
    %55 = tpu.dynamic_rotate %54 by %c4_i32_29 dim 1 : vector<8x256xf32>, i32 -> vector<8x256xf32>
    %56 = arith.truncf %55 : vector<8x256xf32> to vector<8x256xbf16>
    %c2_i32_30 = arith.constant 2 : i32
    %57 = tpu.dynamic_rotate %54 by %c2_i32_30 dim 1 : vector<8x256xf32>, i32 -> vector<8x256xf32>
    %58 = arith.truncf %57 : vector<8x256xf32> to vector<8x256xbf16>
    %59 = arith.truncf %54 : vector<8x256xf32> to vector<8x256xbf16>
    %60 = tpu.concatenate %56, %58, %59 in 0 : vector<8x256xbf16>, vector<8x256xbf16>, vector<8x256xbf16> -> vector<24x256xbf16>
    %c0_31 = arith.constant 0 : index
    %c0_32 = arith.constant 0 : index
    %61 = vector.load %arg11[%c0_31, %c0_32] : memref<8x24xbf16, #tpu.memory_space<vmem>>, vector<8x24xbf16>
    %cst_33 = arith.constant dense<0.000000e+00> : vector<8x256xf32>
    %62 = tpu.matmul %61, %60, %cst_33 {dimension_numbers = #tpu.dot_dimension_numbers<[1], [0], [0], [1], [0, 0, 1, 1], [], []>} : vector<8x24xbf16>, vector<24x256xbf16>, vector<8x256xf32> -> vector<8x256xf32>
    %c0_34 = arith.constant 0 : index
    %c0_35 = arith.constant 0 : index
    %63 = vector.load %arg12[%c0_34, %c0_35] : memref<8x1xf32, #tpu.memory_space<vmem>>, vector<8x1xf32>
    %64 = vector.broadcast %63 : vector<8x1xf32> to vector<8x256xf32>
    %65 = arith.addf %62, %64 : vector<8x256xf32>
    %cst_36 = arith.constant 0.000000e+00 : f32
    %66 = vector.broadcast %cst_36 : f32 to vector<8x256xf32>
    %67 = arith.maximumf %65, %66 : vector<8x256xf32>
    %68 = arith.addf %67, %40 : vector<8x256xf32>
    %cst_37 = arith.constant 0.000000e+00 : f32
    %69 = vector.broadcast %cst_37 : f32 to vector<8x256xf32>
    %70 = arith.maximumf %68, %69 : vector<8x256xf32>
    %71 = arith.mulf %3, %70 : vector<8x256xf32>
    %72 = vector.extract_strided_slice %71 {offsets = [0, 19], sizes = [8, 1], strides = [1, 1]} : vector<8x256xf32> to vector<8x1xf32>
    %73 = vector.extract_strided_slice %71 {offsets = [0, 147], sizes = [8, 1], strides = [1, 1]} : vector<8x256xf32> to vector<8x1xf32>
    %74 = tpu.concatenate %72, %73 in 1 : vector<8x1xf32>, vector<8x1xf32> -> vector<8x2xf32>
    %c0_38 = arith.constant 0 : index
    %c0_39 = arith.constant 0 : index
    %75 = vector.load %arg13[%c0_38, %c0_39] : memref<3x8xbf16, #tpu.memory_space<vmem>>, vector<3x8xbf16>
    %76 = arith.truncf %74 : vector<8x2xf32> to vector<8x2xbf16>
    %cst_40 = arith.constant dense<0.000000e+00> : vector<3x2xf32>
    %77 = tpu.matmul %75, %76, %cst_40 {dimension_numbers = #tpu.dot_dimension_numbers<[1], [0], [0], [1], [0, 0, 1, 1], [], []>} : vector<3x8xbf16>, vector<8x2xbf16>, vector<3x2xf32> -> vector<3x2xf32>
    %c0_41 = arith.constant 0 : index
    %c0_42 = arith.constant 0 : index
    %78 = vector.load %arg14[%c0_41, %c0_42] : memref<3x1xf32, #tpu.memory_space<vmem>>, vector<3x1xf32>
    %79 = vector.broadcast %78 : vector<3x1xf32> to vector<3x2xf32>
    %80 = arith.addf %77, %79 : vector<3x2xf32>
    %cst_43 = arith.constant dense<0xFF800000> : vector<2xf32>
    %81 = vector.multi_reduction <maximumf>, %80, %cst_43 [0] : vector<3x2xf32> to vector<2xf32>
    %82 = vector.shape_cast %81 : vector<2xf32> to vector<1x2xf32>
    %83 = vector.broadcast %82 : vector<1x2xf32> to vector<3x2xf32>
    %84 = arith.subf %80, %83 : vector<3x2xf32>
    %85 = math.exp %84 : vector<3x2xf32>
    %cst_44 = arith.constant dense<0.000000e+00> : vector<2xf32>
    %86 = vector.multi_reduction <add>, %85, %cst_44 [0] : vector<3x2xf32> to vector<2xf32>
    %87 = vector.shape_cast %86 : vector<2xf32> to vector<1x2xf32>
    %88 = math.log %87 : vector<1x2xf32>
    %89 = vector.broadcast %88 : vector<1x2xf32> to vector<3x2xf32>
    %90 = arith.subf %84, %89 : vector<3x2xf32>
    %c0_45 = arith.constant 0 : index
    %c0_46 = arith.constant 0 : index
    %c0_47 = arith.constant 0 : index
    %91 = vector.load %arg15[%c0_45, %c0_46, %c0_47] : memref<1x3x2xf32, #tpu.memory_space<vmem>>, vector<1x3x2xf32>
    %92 = vector.shape_cast %91 : vector<1x3x2xf32> to vector<3x2xf32>
    %93 = vector.shape_cast %90 : vector<3x2xf32> to vector<1x3x2xf32>
    tpu.vector_store %arg15[%c0_45, %c0_46, %c0_47], %93 {strides = array<i32>} : memref<1x3x2xf32, #tpu.memory_space<vmem>>, vector<1x3x2xf32>,
    return
  }
  func.func @transform_0(%arg0: i32) -> (i32, i32) {
    %c0_i32 = arith.constant 0 : i32
    %c0_i32_0 = arith.constant 0 : i32
    return %c0_i32, %arg0 : i32, i32
  }
  func.func @transform_1(%arg0: i32) -> (i32, i32) {
    %c0_i32 = arith.constant 0 : i32
    %c0_i32_0 = arith.constant 0 : i32
    %c0_i32_1 = arith.constant 0 : i32
    return %c0_i32, %c0_i32_0 : i32, i32
  }
  func.func @transform_2(%arg0: i32) -> (i32, i32) {
    %c0_i32 = arith.constant 0 : i32
    %c0_i32_0 = arith.constant 0 : i32
    %c0_i32_1 = arith.constant 0 : i32
    return %c0_i32, %c0_i32_0 : i32, i32
  }
  func.func @transform_3(%arg0: i32) -> (i32, i32) {
    %c0_i32 = arith.constant 0 : i32
    %c0_i32_0 = arith.constant 0 : i32
    %c0_i32_1 = arith.constant 0 : i32
    return %c0_i32, %c0_i32_0 : i32, i32
  }
  func.func @transform_4(%arg0: i32) -> (i32, i32) {
    %c0_i32 = arith.constant 0 : i32
    %c0_i32_0 = arith.constant 0 : i32
    %c0_i32_1 = arith.constant 0 : i32
    return %c0_i32, %c0_i32_0 : i32, i32
  }
  func.func @transform_5(%arg0: i32) -> (i32, i32) {
    %c0_i32 = arith.constant 0 : i32
    %c0_i32_0 = arith.constant 0 : i32
    %c0_i32_1 = arith.constant 0 : i32
    return %c0_i32, %c0_i32_0 : i32, i32
  }
  func.func @transform_6(%arg0: i32) -> (i32, i32) {
    %c0_i32 = arith.constant 0 : i32
    %c0_i32_0 = arith.constant 0 : i32
    %c0_i32_1 = arith.constant 0 : i32
    return %c0_i32, %c0_i32_0 : i32, i32
  }
  func.func @transform_7(%arg0: i32) -> (i32, i32) {
    %c0_i32 = arith.constant 0 : i32
    %c0_i32_0 = arith.constant 0 : i32
    %c0_i32_1 = arith.constant 0 : i32
    return %c0_i32, %c0_i32_0 : i32, i32
  }
  func.func @transform_8(%arg0: i32) -> (i32, i32) {
    %c0_i32 = arith.constant 0 : i32
    %c0_i32_0 = arith.constant 0 : i32
    %c0_i32_1 = arith.constant 0 : i32
    return %c0_i32, %c0_i32_0 : i32, i32
  }
  func.func @transform_9(%arg0: i32) -> (i32, i32) {
    %c0_i32 = arith.constant 0 : i32
    %c0_i32_0 = arith.constant 0 : i32
    %c0_i32_1 = arith.constant 0 : i32
    return %c0_i32, %c0_i32_0 : i32, i32
  }
  func.func @transform_10(%arg0: i32) -> (i32, i32) {
    %c0_i32 = arith.constant 0 : i32
    %c0_i32_0 = arith.constant 0 : i32
    %c0_i32_1 = arith.constant 0 : i32
    return %c0_i32, %c0_i32_0 : i32, i32
  }
  func.func @transform_11(%arg0: i32) -> (i32, i32) {
    %c0_i32 = arith.constant 0 : i32
    %c0_i32_0 = arith.constant 0 : i32
    %c0_i32_1 = arith.constant 0 : i32
    return %c0_i32, %c0_i32_0 : i32, i32
  }
  func.func @transform_12(%arg0: i32) -> (i32, i32) {
    %c0_i32 = arith.constant 0 : i32
    %c0_i32_0 = arith.constant 0 : i32
    %c0_i32_1 = arith.constant 0 : i32
    return %c0_i32, %c0_i32_0 : i32, i32
  }
  func.func @transform_13(%arg0: i32) -> (i32, i32) {
    %c0_i32 = arith.constant 0 : i32
    %c0_i32_0 = arith.constant 0 : i32
    %c0_i32_1 = arith.constant 0 : i32
    return %c0_i32, %c0_i32_0 : i32, i32
  }
  func.func @transform_14(%arg0: i32) -> (i32, i32, i32) {
    %c0_i32 = arith.constant 0 : i32
    %c0_i32_0 = arith.constant 0 : i32
    %c0_i32_1 = arith.constant 0 : i32
    return %arg0, %c0_i32, %c0_i32_0 : i32, i32, i32
  }
}

</mosaic_0001>

<llo_original>
// kernel: tpu_custom_call.1
$region0: #{tpu_custom_call.1}
  #allocation0 [shape = 'u32[]', space=smem, size = 0x4, offset = 0x4, fixed_abs, tag = 'smem constant byte address 0x4 - core index']
  #allocation1 [shape = 'u32[144,128]{1,0:T(1,128)}', space=vmem, size = 0x12000, scoped, tag = 'internal scratch']
  %s0 = inlined_call_operand.vmem [shape: f32[8,256], index: 0, kind: input, shape index: {}]
  %s1 = inlined_call_operand.vmem [shape: f32[1,256], index: 1, kind: input, shape index: {}]
  %s2 = inlined_call_operand.vmem [shape: bf16[8,24], index: 2, kind: input, shape index: {}]
  %s3 = inlined_call_operand.vmem [shape: f32[8,1], index: 3, kind: input, shape index: {}]
  %s4 = inlined_call_operand.vmem [shape: bf16[8,24], index: 4, kind: input, shape index: {}]
  %s5 = inlined_call_operand.vmem [shape: f32[8,1], index: 5, kind: input, shape index: {}]
  %s6 = inlined_call_operand.vmem [shape: bf16[8,8], index: 6, kind: input, shape index: {}]
  %s7 = inlined_call_operand.vmem [shape: f32[8,1], index: 7, kind: input, shape index: {}]
  %s8 = inlined_call_operand.vmem [shape: bf16[8,24], index: 8, kind: input, shape index: {}]
  %s9 = inlined_call_operand.vmem [shape: f32[8,1], index: 9, kind: input, shape index: {}]
  %s10 = inlined_call_operand.vmem [shape: bf16[8,24], index: 10, kind: input, shape index: {}]
  %s11 = inlined_call_operand.vmem [shape: f32[8,1], index: 11, kind: input, shape index: {}]
  %s12 = inlined_call_operand.vmem [shape: bf16[3,8], index: 12, kind: input, shape index: {}]
  %s13 = inlined_call_operand.vmem [shape: f32[3,1], index: 13, kind: input, shape index: {}]
  %s14 = inlined_call_operand.vmem [shape: f32[1,3,2], index: 14, kind: output, shape index: {}]
  %s15 = sld [smem:[#allocation0]]
  $region66: #{tpu_custom_call.1} parent=0
    _
  %s17 = ssub.s32 1, %s15
  %s18 = scalar_select 0, %s17, %s15
  // Predicated region
  $region2: #{tpu_custom_call.1} parent=0 // pred_check
    _
  $region3: #{tpu_custom_call.1} parent=0 // pred_check_branch
    %20 = sbr.rel (0) target = $region5
  $region4: #{tpu_custom_call.1} parent=0 // pred_region
    _
  $region5: #{tpu_custom_call.1} parent=0 // pred_fallthru
    _
  // Predicated region
  $region6: #{tpu_custom_call.1} parent=0 // pred_check
    _
  $region7: #{tpu_custom_call.1} parent=0 // pred_check_branch
    %22 = sbr.rel (0) target = $region9
  $region8: #{tpu_custom_call.1} parent=0 // pred_region
    _
  $region9: #{tpu_custom_call.1} parent=0 // pred_fallthru
    _
  // Predicated region
  $region10: #{tpu_custom_call.1} parent=0 // pred_check
    _
  $region11: #{tpu_custom_call.1} parent=0 // pred_check_branch
    %24 = sbr.rel (0) target = $region13
  $region12: #{tpu_custom_call.1} parent=0 // pred_region
    _
  $region13: #{tpu_custom_call.1} parent=0 // pred_fallthru
    _
  // Predicated region
  $region14: #{tpu_custom_call.1} parent=0 // pred_check
    _
  $region15: #{tpu_custom_call.1} parent=0 // pred_check_branch
    %26 = sbr.rel (0) target = $region17
  $region16: #{tpu_custom_call.1} parent=0 // pred_region
    _
  $region17: #{tpu_custom_call.1} parent=0 // pred_fallthru
    _
  // Predicated region
  $region18: #{tpu_custom_call.1} parent=0 // pred_check
    _
  $region19: #{tpu_custom_call.1} parent=0 // pred_check_branch
    %28 = sbr.rel (0) target = $region21
  $region20: #{tpu_custom_call.1} parent=0 // pred_region
    _
  $region21: #{tpu_custom_call.1} parent=0 // pred_fallthru
    _
  // Predicated region
  $region22: #{tpu_custom_call.1} parent=0 // pred_check
    _
  $region23: #{tpu_custom_call.1} parent=0 // pred_check_branch
    %30 = sbr.rel (0) target = $region25
  $region24: #{tpu_custom_call.1} parent=0 // pred_region
    _
  $region25: #{tpu_custom_call.1} parent=0 // pred_fallthru
    _
  // Predicated region
  $region26: #{tpu_custom_call.1} parent=0 // pred_check
    _
  $region27: #{tpu_custom_call.1} parent=0 // pred_check_branch
    %32 = sbr.rel (0) target = $region29
  $region28: #{tpu_custom_call.1} parent=0 // pred_region
    _
  $region29: #{tpu_custom_call.1} parent=0 // pred_fallthru
    _
  // Predicated region
  $region30: #{tpu_custom_call.1} parent=0 // pred_check
    _
  $region31: #{tpu_custom_call.1} parent=0 // pred_check_branch
    %34 = sbr.rel (0) target = $region33
  $region32: #{tpu_custom_call.1} parent=0 // pred_region
    _
  $region33: #{tpu_custom_call.1} parent=0 // pred_fallthru
    _
  // Predicated region
  $region34: #{tpu_custom_call.1} parent=0 // pred_check
    _
  $region35: #{tpu_custom_call.1} parent=0 // pred_check_branch
    %36 = sbr.rel (0) target = $region37
  $region36: #{tpu_custom_call.1} parent=0 // pred_region
    _
  $region37: #{tpu_custom_call.1} parent=0 // pred_fallthru
    _
  // Predicated region
  $region38: #{tpu_custom_call.1} parent=0 // pred_check
    _
  $region39: #{tpu_custom_call.1} parent=0 // pred_check_branch
    %38 = sbr.rel (0) target = $region41
  $region40: #{tpu_custom_call.1} parent=0 // pred_region
    _
  $region41: #{tpu_custom_call.1} parent=0 // pred_fallthru
    _
  // Predicated region
  $region42: #{tpu_custom_call.1} parent=0 // pred_check
    _
  $region43: #{tpu_custom_call.1} parent=0 // pred_check_branch
    %40 = sbr.rel (0) target = $region45
  $region44: #{tpu_custom_call.1} parent=0 // pred_region
    _
  $region45: #{tpu_custom_call.1} parent=0 // pred_fallthru
    _
  // Predicated region
  $region46: #{tpu_custom_call.1} parent=0 // pred_check
    _
  $region47: #{tpu_custom_call.1} parent=0 // pred_check_branch
    %42 = sbr.rel (0) target = $region49
  $region48: #{tpu_custom_call.1} parent=0 // pred_region
    _
  $region49: #{tpu_custom_call.1} parent=0 // pred_fallthru
    _
  // Predicated region
  $region50: #{tpu_custom_call.1} parent=0 // pred_check
    _
  $region51: #{tpu_custom_call.1} parent=0 // pred_check_branch
    %44 = sbr.rel (0) target = $region53
  $region52: #{tpu_custom_call.1} parent=0 // pred_region
    _
  $region53: #{tpu_custom_call.1} parent=0 // pred_fallthru
    _
  // Predicated region
  $region54: #{tpu_custom_call.1} parent=0 // pred_check
    _
  $region55: #{tpu_custom_call.1} parent=0 // pred_check_branch
    %46 = sbr.rel (0) target = $region57
  $region56: #{tpu_custom_call.1} parent=0 // pred_region
    _
  $region57: #{tpu_custom_call.1} parent=0 // pred_fallthru
    _
  %v48 = vld [vmem:[%s0] sm:$0xff]
  %v49 = vld [vmem:[%s0 + $0x8] sm:$0xff]
  %v50 = vld [vmem:[%s1] sm:$0x3]
  %v52 = vlaneseq
  %v53 = vshrl.u32 %v52, 7
  %v54 = vsub.s32 0, %v53
  %v55 = vrot.slane %v50, %v54
  %v56 = vlaneseq
  %v57 = vshrl.u32 %v56, 7
  %v58 = vsub.s32 1, %v57
  %v59 = vrot.slane %v50, %v58
  %62 = vrot.lane.b32.xlu0 %v48, 2
  %v63 = vpop.permute.xlu0 %62
  %64 = vrot.lane.b32.xlu0 %v49, 2
  %v65 = vpop.permute.xlu0 %64
  %v66 = vlaneseq
  %v67 = vand.u32 %v66, 127
  %vm68 = vcmp.lt.s32.totalorder %v67, 2
  %v69 = vsel %vm68, %v63, %v65
  %v70 = vsel %vm68, %v65, %v63
  %v71 = vpack.c.bf16 %v70, %v70
  %v72 = vpack.c.bf16 %v69, %v69
  %73 = vrot.lane.b32.xlu0 %v48, 1
  %v74 = vpop.permute.xlu0 %73
  %75 = vrot.lane.b32.xlu0 %v49, 1
  %v76 = vpop.permute.xlu0 %75
  %vm77 = vcmp.lt.s32.totalorder %v67, 1
  %v78 = vsel %vm77, %v74, %v76
  %v79 = vsel %vm77, %v76, %v74
  %v80 = vpack.c.bf16 %v79, %v79
  %v81 = vpack.c.bf16 %v78, %v78
  %v82 = vpack.c.bf16 %v48, %v48
  %v83 = vpack.c.bf16 %v49, %v49
  %v86 = vrot.slane %v80, 4
  %v87 = vrot.slane %v81, 4
  %vm88 = vcmask 1043456
  %v91 = vsel %vm88, %v71, %v86
  %v95 = vsel %vm88, %v72, %v87
  %v97 = vld [vmem:[%s2] sm:$0xf]
  %v98 = vld [vmem:[%s3] sm:$0xff]
  %100 = vset.pattern.permute.xlu0 0
  %101 = vperm.xlu0 %100, %v98
  %v102 = vpop.permute.xlu0 %101
  %vm104 = vcmask 195584
  %v106 = vsel %vm104, %v97, 0
  %v109 = vsel %vm88, %v82, 0
  %v112 = vsel %vm88, %v83, 0
  %114 = vmatprep.subr.bf16.mxu0 %v95
  %115 = vmatpush1.bf16.msra.mxu0 %v91
  %116 = vmatprep.subr.bf16.mxu0 %v112
  %117 = vmatpush1.bf16.msra.mxu0 %v109
  %118 = vmatprep.subr.bf16.mxu0 0
  %119 = vmatpush1.bf16.msra.mxu0 0
  %120 = vmatprep.subr.bf16.mxu0 0
  %121 = vmatpush1.bf16.msra.mxu0 0
  %122 = vmatprep.subr.bf16.mxu0 0
  %123 = vmatpush1.bf16.msra.mxu0 0
  %124 = vmatprep.subr.bf16.mxu0 0
  %125 = vmatpush1.bf16.msra.mxu0 0
  %126 = vmatprep.subr.bf16.mxu0 0
  %127 = vmatpush1.bf16.msra.mxu0 0
  %128 = vmatprep.subr.bf16.mxu0 0
  %129 = vmatpush1.bf16.msra.mxu0 0
  %130 = vmatprep.subr.bf16.mxu0 0
  %131 = vmatpush1.bf16.msra.mxu0 0
  %132 = vmatprep.subr.bf16.mxu0 0
  %133 = vmatpush1.bf16.msra.mxu0 0
  %134 = vmatprep.subr.bf16.mxu0 0
  %135 = vmatpush1.bf16.msra.mxu0 0
  %136 = vmatprep.subr.bf16.mxu0 0
  %137 = vmatpush1.bf16.msra.mxu0 0
  %138 = vmatprep.subr.bf16.mxu0 0
  %139 = vmatpush1.bf16.msra.mxu0 0
  %140 = vmatprep.subr.bf16.mxu0 0
  %141 = vmatpush1.bf16.msra.mxu0 0
  %142 = vmatprep.subr.bf16.mxu0 0
  %143 = vmatpush1.bf16.msra.mxu0 0
  %144 = vmatprep.subr.bf16.mxu0 0
  %145 = vmatpush1.bf16.msra.mxu0 0
  %146 = vmatprep.mubr.bf16.mxu0 0
  %147 = vmatmul.mubr.bf16.gmra.mrb[0].mxu0 %v106
  %v148 = vpop.f32.mrb[0].mxu0
  %v149 = vadd.f32 %v102, %v148
  %v150 = vpop.f32.mrb[0].mxu0
  %v151 = vadd.f32 %v102, %v150
  %v152 = vpop.f32.mrb[0].mxu0
  %v153 = vpop.f32.mrb[0].mxu0
  %154 = vdwg.mxu0
  %v155 = vmax.f32 %v149, 0.0
  %v156 = vmax.f32 %v151, 0.0
  %v157 = vmul.f32 %v55, %v155
  %v158 = vmul.f32 %v59, %v156
  %159 = vrot.lane.b32.xlu0 %v157, 2
  %v160 = vpop.permute.xlu0 %159
  %161 = vrot.lane.b32.xlu0 %v158, 2
  %v162 = vpop.permute.xlu0 %161
  %v163 = vsel %vm68, %v160, %v162
  %v164 = vsel %vm68, %v162, %v160
  %v165 = vpack.c.bf16 %v164, %v164
  %v166 = vpack.c.bf16 %v163, %v163
  %167 = vrot.lane.b32.xlu0 %v157, 1
  %v168 = vpop.permute.xlu0 %167
  %169 = vrot.lane.b32.xlu0 %v158, 1
  %v170 = vpop.permute.xlu0 %169
  %v171 = vsel %vm77, %v168, %v170
  %v172 = vsel %vm77, %v170, %v168
  %v173 = vpack.c.bf16 %v172, %v172
  %v174 = vpack.c.bf16 %v171, %v171
  %v175 = vpack.c.bf16 %v157, %v157
  %v176 = vpack.c.bf16 %v158, %v158
  %v179 = vrot.slane %v173, 4
  %v180 = vrot.slane %v174, 4
  %v183 = vsel %vm88, %v165, %v179
  %v187 = vsel %vm88, %v166, %v180
  %v189 = vld [vmem:[%s4] sm:$0xf]
  %v190 = vld [vmem:[%s5] sm:$0xff]
  %192 = vset.pattern.permute.xlu0 0
  %193 = vperm.xlu0 %192, %v190
  %v194 = vpop.permute.xlu0 %193
  %v197 = vsel %vm104, %v189, 0
  %v200 = vsel %vm88, %v175, 0
  %v203 = vsel %vm88, %v176, 0
  %205 = vmatprep.subr.bf16.mxu0 %v187
  %206 = vmatpush1.bf16.msra.mxu0 %v183
  %207 = vmatprep.subr.bf16.mxu0 %v203
  %208 = vmatpush1.bf16.msra.mxu0 %v200
  %209 = vmatprep.subr.bf16.mxu0 0
  %210 = vmatpush1.bf16.msra.mxu0 0
  %211 = vmatprep.subr.bf16.mxu0 0
  %212 = vmatpush1.bf16.msra.mxu0 0
  %213 = vmatprep.subr.bf16.mxu0 0
  %214 = vmatpush1.bf16.msra.mxu0 0
  %215 = vmatprep.subr.bf16.mxu0 0
  %216 = vmatpush1.bf16.msra.mxu0 0
  %217 = vmatprep.subr.bf16.mxu0 0
  %218 = vmatpush1.bf16.msra.mxu0 0
  %219 = vmatprep.subr.bf16.mxu0 0
  %220 = vmatpush1.bf16.msra.mxu0 0
  %221 = vmatprep.subr.bf16.mxu0 0
  %222 = vmatpush1.bf16.msra.mxu0 0
  %223 = vmatprep.subr.bf16.mxu0 0
  %224 = vmatpush1.bf16.msra.mxu0 0
  %225 = vmatprep.subr.bf16.mxu0 0
  %226 = vmatpush1.bf16.msra.mxu0 0
  %227 = vmatprep.subr.bf16.mxu0 0
  %228 = vmatpush1.bf16.msra.mxu0 0
  %229 = vmatprep.subr.bf16.mxu0 0
  %230 = vmatpush1.bf16.msra.mxu0 0
  %231 = vmatprep.subr.bf16.mxu0 0
  %232 = vmatpush1.bf16.msra.mxu0 0
  %233 = vmatprep.subr.bf16.mxu0 0
  %234 = vmatpush1.bf16.msra.mxu0 0
  %235 = vmatprep.subr.bf16.mxu0 0
  %236 = vmatpush1.bf16.msra.mxu0 0
  %237 = vmatprep.mubr.bf16.mxu0 0
  %238 = vmatmul.mubr.bf16.gmra.mrb[0].mxu0 %v197
  %v239 = vpop.f32.mrb[0].mxu0
  %v240 = vadd.f32 %v194, %v239
  %v241 = vpop.f32.mrb[0].mxu0
  %v242 = vadd.f32 %v194, %v241
  %v243 = vpop.f32.mrb[0].mxu0
  %v244 = vpop.f32.mrb[0].mxu0
  %245 = vdwg.mxu0
  %v246 = vmax.f32 %v240, 0.0
  %v247 = vmax.f32 %v242, 0.0
  %v248 = vld [vmem:[%s6] sm:$0xf]
  %v249 = vld [vmem:[%s7] sm:$0xff]
  %251 = vset.pattern.permute.xlu0 0
  %252 = vperm.xlu0 %251, %v249
  %v253 = vpop.permute.xlu0 %252
  %vm255 = vcmask 64512
  %v257 = vsel %vm255, %v248, 0
  %259 = vmatprep.subr.bf16.mxu0 %v112
  %260 = vmatpush1.bf16.msra.mxu0 %v109
  %261 = vmatprep.subr.bf16.mxu0 0
  %262 = vmatpush1.bf16.msra.mxu0 0
  %263 = vmatprep.subr.bf16.mxu0 0
  %264 = vmatpush1.bf16.msra.mxu0 0
  %265 = vmatprep.subr.bf16.mxu0 0
  %266 = vmatpush1.bf16.msra.mxu0 0
  %267 = vmatprep.subr.bf16.mxu0 0
  %268 = vmatpush1.bf16.msra.mxu0 0
  %269 = vmatprep.subr.bf16.mxu0 0
  %270 = vmatpush1.bf16.msra.mxu0 0
  %271 = vmatprep.subr.bf16.mxu0 0
  %272 = vmatpush1.bf16.msra.mxu0 0
  %273 = vmatprep.subr.bf16.mxu0 0
  %274 = vmatpush1.bf16.msra.mxu0 0
  %275 = vmatprep.subr.bf16.mxu0 0
  %276 = vmatpush1.bf16.msra.mxu0 0
  %277 = vmatprep.subr.bf16.mxu0 0
  %278 = vmatpush1.bf16.msra.mxu0 0
  %279 = vmatprep.subr.bf16.mxu0 0
  %280 = vmatpush1.bf16.msra.mxu0 0
  %281 = vmatprep.subr.bf16.mxu0 0
  %282 = vmatpush1.bf16.msra.mxu0 0
  %283 = vmatprep.subr.bf16.mxu0 0
  %284 = vmatpush1.bf16.msra.mxu0 0
  %285 = vmatprep.subr.bf16.mxu0 0
  %286 = vmatpush1.bf16.msra.mxu0 0
  %287 = vmatprep.subr.bf16.mxu0 0
  %288 = vmatpush1.bf16.msra.mxu0 0
  %289 = vmatprep.subr.bf16.mxu0 0
  %290 = vmatpush1.bf16.msra.mxu0 0
  %291 = vmatprep.mubr.bf16.mxu0 0
  %292 = vmatmul.mubr.bf16.gmra.mrb[0].mxu0 %v257
  %v293 = vpop.f32.mrb[0].mxu0
  %v294 = vadd.f32 %v253, %v293
  %v295 = vpop.f32.mrb[0].mxu0
  %v296 = vadd.f32 %v253, %v295
  %v297 = vpop.f32.mrb[0].mxu0
  %v298 = vpop.f32.mrb[0].mxu0
  %299 = vdwg.mxu0
  %v300 = vadd.f32 %v246, %v294
  %v301 = vadd.f32 %v247, %v296
  %v302 = vmax.f32 %v300, 0.0
  %v303 = vmax.f32 %v301, 0.0
  %v304 = vmul.f32 %v55, %v302
  %v305 = vmul.f32 %v59, %v303
  %306 = vrot.lane.b32.xlu0 %v304, 4
  %v307 = vpop.permute.xlu0 %306
  %308 = vrot.lane.b32.xlu0 %v305, 4
  %v309 = vpop.permute.xlu0 %308
  %vm310 = vcmp.lt.s32.totalorder %v67, 4
  %v311 = vsel %vm310, %v307, %v309
  %v312 = vsel %vm310, %v309, %v307
  %v313 = vpack.c.bf16 %v312, %v312
  %v314 = vpack.c.bf16 %v311, %v311
  %315 = vrot.lane.b32.xlu0 %v304, 2
  %v316 = vpop.permute.xlu0 %315
  %317 = vrot.lane.b32.xlu0 %v305, 2
  %v318 = vpop.permute.xlu0 %317
  %v319 = vsel %vm68, %v316, %v318
  %v320 = vsel %vm68, %v318, %v316
  %v321 = vpack.c.bf16 %v320, %v320
  %v322 = vpack.c.bf16 %v319, %v319
  %v323 = vpack.c.bf16 %v304, %v304
  %v324 = vpack.c.bf16 %v305, %v305
  %v327 = vrot.slane %v321, 4
  %v328 = vrot.slane %v322, 4
  %v331 = vsel %vm88, %v313, %v327
  %v335 = vsel %vm88, %v314, %v328
  %v337 = vld [vmem:[%s8] sm:$0xf]
  %v338 = vld [vmem:[%s9] sm:$0xff]
  %340 = vset.pattern.permute.xlu0 0
  %341 = vperm.xlu0 %340, %v338
  %v342 = vpop.permute.xlu0 %341
  %v345 = vsel %vm104, %v337, 0
  %v348 = vsel %vm88, %v323, 0
  %v351 = vsel %vm88, %v324, 0
  %353 = vmatprep.subr.bf16.mxu0 %v335
  %354 = vmatpush1.bf16.msra.mxu0 %v331
  %355 = vmatprep.subr.bf16.mxu0 %v351
  %356 = vmatpush1.bf16.msra.mxu0 %v348
  %357 = vmatprep.subr.bf16.mxu0 0
  %358 = vmatpush1.bf16.msra.mxu0 0
  %359 = vmatprep.subr.bf16.mxu0 0
  %360 = vmatpush1.bf16.msra.mxu0 0
  %361 = vmatprep.subr.bf16.mxu0 0
  %362 = vmatpush1.bf16.msra.mxu0 0
  %363 = vmatprep.subr.bf16.mxu0 0
  %364 = vmatpush1.bf16.msra.mxu0 0
  %365 = vmatprep.subr.bf16.mxu0 0
  %366 = vmatpush1.bf16.msra.mxu0 0
  %367 = vmatprep.subr.bf16.mxu0 0
  %368 = vmatpush1.bf16.msra.mxu0 0
  %369 = vmatprep.subr.bf16.mxu0 0
  %370 = vmatpush1.bf16.msra.mxu0 0
  %371 = vmatprep.subr.bf16.mxu0 0
  %372 = vmatpush1.bf16.msra.mxu0 0
  %373 = vmatprep.subr.bf16.mxu0 0
  %374 = vmatpush1.bf16.msra.mxu0 0
  %375 = vmatprep.subr.bf16.mxu0 0
  %376 = vmatpush1.bf16.msra.mxu0 0
  %377 = vmatprep.subr.bf16.mxu0 0
  %378 = vmatpush1.bf16.msra.mxu0 0
  %379 = vmatprep.subr.bf16.mxu0 0
  %380 = vmatpush1.bf16.msra.mxu0 0
  %381 = vmatprep.subr.bf16.mxu0 0
  %382 = vmatpush1.bf16.msra.mxu0 0
  %383 = vmatprep.subr.bf16.mxu0 0
  %384 = vmatpush1.bf16.msra.mxu0 0
  %385 = vmatprep.mubr.bf16.mxu0 0
  %386 = vmatmul.mubr.bf16.gmra.mrb[0].mxu0 %v345
  %v387 = vpop.f32.mrb[0].mxu0
  %v388 = vadd.f32 %v342, %v387
  %v389 = vpop.f32.mrb[0].mxu0
  %v390 = vadd.f32 %v342, %v389
  %v391 = vpop.f32.mrb[0].mxu0
  %v392 = vpop.f32.mrb[0].mxu0
  %393 = vdwg.mxu0
  %v394 = vmax.f32 %v388, 0.0
  %v395 = vmax.f32 %v390, 0.0
  %v396 = vmul.f32 %v55, %v394
  %v397 = vmul.f32 %v59, %v395
  %398 = vrot.lane.b32.xlu0 %v396, 4
  %v399 = vpop.permute.xlu0 %398
  %400 = vrot.lane.b32.xlu0 %v397, 4
  %v401 = vpop.permute.xlu0 %400
  %v402 = vsel %vm310, %v399, %v401
  %v403 = vsel %vm310, %v401, %v399
  %v404 = vpack.c.bf16 %v403, %v403
  %v405 = vpack.c.bf16 %v402, %v402
  %406 = vrot.lane.b32.xlu0 %v396, 2
  %v407 = vpop.permute.xlu0 %406
  %408 = vrot.lane.b32.xlu0 %v397, 2
  %v409 = vpop.permute.xlu0 %408
  %v410 = vsel %vm68, %v407, %v409
  %v411 = vsel %vm68, %v409, %v407
  %v412 = vpack.c.bf16 %v411, %v411
  %v413 = vpack.c.bf16 %v410, %v410
  %v414 = vpack.c.bf16 %v396, %v396
  %v415 = vpack.c.bf16 %v397, %v397
  %v418 = vrot.slane %v412, 4
  %v419 = vrot.slane %v413, 4
  %v422 = vsel %vm88, %v404, %v418
  %v426 = vsel %vm88, %v405, %v419
  %v428 = vld [vmem:[%s10] sm:$0xf]
  %v429 = vld [vmem:[%s11] sm:$0xff]
  %431 = vset.pattern.permute.xlu0 0
  %432 = vperm.xlu0 %431, %v429
  %v433 = vpop.permute.xlu0 %432
  %v436 = vsel %vm104, %v428, 0
  %v439 = vsel %vm88, %v414, 0
  %v442 = vsel %vm88, %v415, 0
  %444 = vmatprep.subr.bf16.mxu0 %v426
  %445 = vmatpush1.bf16.msra.mxu0 %v422
  %446 = vmatprep.subr.bf16.mxu0 %v442
  %447 = vmatpush1.bf16.msra.mxu0 %v439
  %448 = vmatprep.subr.bf16.mxu0 0
  %449 = vmatpush1.bf16.msra.mxu0 0
  %450 = vmatprep.subr.bf16.mxu0 0
  %451 = vmatpush1.bf16.msra.mxu0 0
  %452 = vmatprep.subr.bf16.mxu0 0
  %453 = vmatpush1.bf16.msra.mxu0 0
  %454 = vmatprep.subr.bf16.mxu0 0
  %455 = vmatpush1.bf16.msra.mxu0 0
  %456 = vmatprep.subr.bf16.mxu0 0
  %457 = vmatpush1.bf16.msra.mxu0 0
  %458 = vmatprep.subr.bf16.mxu0 0
  %459 = vmatpush1.bf16.msra.mxu0 0
  %460 = vmatprep.subr.bf16.mxu0 0
  %461 = vmatpush1.bf16.msra.mxu0 0
  %462 = vmatprep.subr.bf16.mxu0 0
  %463 = vmatpush1.bf16.msra.mxu0 0
  %464 = vmatprep.subr.bf16.mxu0 0
  %465 = vmatpush1.bf16.msra.mxu0 0
  %466 = vmatprep.subr.bf16.mxu0 0
  %467 = vmatpush1.bf16.msra.mxu0 0
  %468 = vmatprep.subr.bf16.mxu0 0
  %469 = vmatpush1.bf16.msra.mxu0 0
  %470 = vmatprep.subr.bf16.mxu0 0
  %471 = vmatpush1.bf16.msra.mxu0 0
  %472 = vmatprep.subr.bf16.mxu0 0
  %473 = vmatpush1.bf16.msra.mxu0 0
  %474 = vmatprep.subr.bf16.mxu0 0
  %475 = vmatpush1.bf16.msra.mxu0 0
  %476 = vmatprep.mubr.bf16.mxu0 0
  %477 = vmatmul.mubr.bf16.gmra.mrb[0].mxu0 %v436
  %v478 = vpop.f32.mrb[0].mxu0
  %v479 = vadd.f32 %v433, %v478
  %v480 = vpop.f32.mrb[0].mxu0
  %v481 = vadd.f32 %v433, %v480
  %v482 = vpop.f32.mrb[0].mxu0
  %v483 = vpop.f32.mrb[0].mxu0
  %484 = vdwg.mxu0
  %v485 = vmax.f32 %v479, 0.0
  %v486 = vmax.f32 %v481, 0.0
  %v487 = vadd.f32 %v485, %v304
  %v488 = vadd.f32 %v486, %v305
  %v489 = vmax.f32 %v487, 0.0
  %v490 = vmax.f32 %v488, 0.0
  %v491 = vmul.f32 %v55, %v489
  %v492 = vmul.f32 %v59, %v490
  %494 = vrot.lane.b32.xlu0 %v491, 109
  %v495 = vpop.permute.xlu0 %494
  %498 = vrot.lane.b32.xlu0 %v492, 110
  %v499 = vpop.permute.xlu0 %498
  %vm501 = vcmask 7168
  %v502 = vsel %vm501, %v495, %v499
  %v503 = vld [vmem:[%s12] sm:$0x3]
  %v504 = vpack.c.bf16 %v502, %v502
  %v505 = vld [vmem:[%s13] sm:$0x7]
  %507 = vset.pattern.permute.xlu0 0
  %508 = vperm.xlu0 %507, %v505
  %v509 = vpop.permute.xlu0 %508
  %v512 = vsel %vm255, %v503, 0
  %v515 = vsel %vm88, %v504, 0
  %517 = vmatprep.subr.bf16.mxu0 0
  %518 = vmatpush1.bf16.msra.mxu0 %v515
  %519 = vmatprep.subr.bf16.mxu0 0
  %520 = vmatpush1.bf16.msra.mxu0 0
  %521 = vmatprep.subr.bf16.mxu0 0
  %522 = vmatpush1.bf16.msra.mxu0 0
  %523 = vmatprep.subr.bf16.mxu0 0
  %524 = vmatpush1.bf16.msra.mxu0 0
  %525 = vmatprep.subr.bf16.mxu0 0
  %526 = vmatpush1.bf16.msra.mxu0 0
  %527 = vmatprep.subr.bf16.mxu0 0
  %528 = vmatpush1.bf16.msra.mxu0 0
  %529 = vmatprep.subr.bf16.mxu0 0
  %530 = vmatpush1.bf16.msra.mxu0 0
  %531 = vmatprep.subr.bf16.mxu0 0
  %532 = vmatpush1.bf16.msra.mxu0 0
  %533 = vmatprep.subr.bf16.mxu0 0
  %534 = vmatpush1.bf16.msra.mxu0 0
  %535 = vmatprep.subr.bf16.mxu0 0
  %536 = vmatpush1.bf16.msra.mxu0 0
  %537 = vmatprep.subr.bf16.mxu0 0
  %538 = vmatpush1.bf16.msra.mxu0 0
  %539 = vmatprep.subr.bf16.mxu0 0
  %540 = vmatpush1.bf16.msra.mxu0 0
  %541 = vmatprep.subr.bf16.mxu0 0
  %542 = vmatpush1.bf16.msra.mxu0 0
  %543 = vmatprep.subr.bf16.mxu0 0
  %544 = vmatpush1.bf16.msra.mxu0 0
  %545 = vmatprep.subr.bf16.mxu0 0
  %546 = vmatpush1.bf16.msra.mxu0 0
  %547 = vmatprep.subr.bf16.mxu0 0
  %548 = vmatpush1.bf16.msra.mxu0 0
  %549 = vmatprep.mubr.bf16.mxu0 0
  %550 = vmatmul.mubr.bf16.gmra.mrb[0].mxu0 %v512
  %v551 = vpop.f32.mrb[0].mxu0
  %v552 = vadd.f32 %v509, %v551
  %v553 = vpop.f32.mrb[0].mxu0
  %v554 = vpop.f32.mrb[0].mxu0
  %v555 = vpop.f32.mrb[0].mxu0
  %556 = vdwg.mxu0
  %vm557 = vcmask 10240
  %v558 = vsel %vm557, %v552, -inf
  %v559 = vrot.slane %v558, 4
  %v560 = vmax.f32 %v558, %v559
  %v561 = vrot.slane %v560, 2
  %v562 = vmax.f32 %v560, %v561
  %v563 = vrot.slane %v562, 1
  %v564 = vmax.f32 %v562, %v563
  %v565 = vsub.f32 %v552, %v564
  %v566 = vmul.f32 %v565, 1.442695
  %v567 = vpow.pop %v566
  %v568 = vsel %vm557, %v567, 0.0
  %v569 = vrot.slane %v568, 4
  %v570 = vadd.f32 %v568, %v569
  %v571 = vrot.slane %v570, 2
  %v572 = vadd.f32 %v570, %v571
  %v573 = vrot.slane %v572, 1
  %v574 = vadd.f32 %v572, %v573
  %v575 = vlog2.pop %v574
  %v576 = vmul.f32 %v575, 0.6931472
  %v577 = vsub.f32 %v565, %v576
  %578 = vst.msk [vmem:[%s14] sm:$0x7] %vm557, %v577
  // Predicated region
  $region58: #{tpu_custom_call.1} parent=0 // pred_check
    _
  $region59: #{tpu_custom_call.1} parent=0 // pred_check_branch
    %580 = sbr.rel (0) target = $region61
  $region60: #{tpu_custom_call.1} parent=0 // pred_region
    _
  $region61: #{tpu_custom_call.1} parent=0 // pred_fallthru
    _
  // Predicated region
  $region62: #{tpu_custom_call.1} parent=0 // pred_check
    _
  $region63: #{tpu_custom_call.1} parent=0 // pred_check_branch
    %582 = sbr.rel (0) target = $region65
  $region64: #{tpu_custom_call.1} parent=0 // pred_region
    _
  $region65: #{tpu_custom_call.1} parent=0 // pred_fallthru
    _

</llo_original>
